<compile_context>
chip_gen: v5e
topology: v5e:2x2
jax: 0.10.0
libtpu: 0.0.40
codegen_flags: <defaults>
</compile_context>

<pallas_src>
import functools

import jax
import jax.numpy as jnp
from jax.experimental import pallas as pl
from jax.experimental.pallas import tpu as pltpu

_LANE = 128
_SUBLANE = 8
_GELU_C1 = 0.7978845608028654          # sqrt(2/pi)
_GELU_C2 = _GELU_C1 * 0.044715         # folded constant: c * 0.044715

_CAN_SINGLE_BUFFER = hasattr(pl, "Buffered")


def _round_up(x, n):
    return ((x + n - 1) // n) * n


def _vmem_capacity_bytes():
    """Per-core VMEM capacity; conservative 64 MiB (v7x) if query unavailable."""
    try:
        return int(pltpu.get_tpu_info().vmem_capacity_bytes)
    except Exception:
        return 64 * 1024 * 1024


def _pick_tile_m(m, budget_bytes, fixed_bytes, per_row_bytes):
    """Largest batch tile whose resident footprint fits the VMEM budget."""
    m_min = _round_up(max(m, 1), _SUBLANE)
    cands = {2048, 1024, 512, 256, 128, 64, 32, 16, 8}
    if m_min <= 2048:
        cands.add(m_min)           # single-tile option for small/medium batch
    cands = sorted(c for c in cands if c <= m_min)
    for cand in reversed(cands):
        if fixed_bytes + cand * per_row_bytes <= budget_bytes:
            return cand
    return cands[0] if cands else m_min


def _fused_ff_kernel(x_ref, *refs, shortcut_flags):
    """Fused stack: x -> [GELU(x@W+b) (+x if shapes match)] per layer.

    refs = (w0, b0, w1, b1, ..., out). Feature dims are 128-padded with zero
    weights/bias so padded columns stay exactly 0 through every layer
    (GELU(0) == 0) and through the residual adds.
    """
    o_ref = refs[-1]
    wb = refs[:-1]
    x = x_ref[...].astype(jnp.float32)          # elementwise math in f32
    for i, add_shortcut in enumerate(shortcut_flags):
        w = wb[2 * i][...]
        b = wb[2 * i + 1][...]                  # f32 bias
        xm = x if w.dtype == x.dtype else x.astype(w.dtype)   # bf16 MXU path
        y = jnp.dot(xm, w, preferred_element_type=jnp.float32) + b
        # naive_GELU (tanh approx), constants folded, y^2 reused:
        y2 = y * y
        g = 0.5 * y * (1.0 + jnp.tanh(y * (_GELU_C1 + _GELU_C2 * y2)))
        x = x + g if add_shortcut else g
    o_ref[...] = x.astype(o_ref.dtype)


def make_deep_feed_forward(params, use_shortcut, *, weight_dtype=jnp.float32):
    """Build the fused forward.  Parameter padding is done ONCE here.

    params: list of (w, b) with w: (d_in, d_out) (transpose of
            nn.Linear.weight) and b: (d_out,) or (1, d_out).
    weight_dtype: jnp.float32 (bit-faithful) or jnp.bfloat16 (fast MXU path;
            looser precision — do not expect 1e-5 parity with f32).
    """
    d_in0 = params[0][0].shape[0]
    d_out_last = params[-1][0].shape[1]
    # Static per-layer shortcut flags (PyTorch shape check with fixed batch
    # reduces to d_in == d_out).
    shortcut_flags = tuple(
        bool(use_shortcut) and (w.shape[0] == w.shape[1]) for (w, _) in params
    )

    # ---- one-time lane (128) zero-padding of weights / biases --------------
    d0_pad = _round_up(d_in0, _LANE)
    padded = []
    in_pad = d0_pad
    for (w, b) in params:
        di, do = w.shape
        do_pad = _round_up(do, _LANE)
        w_p = jnp.zeros((in_pad, do_pad), weight_dtype).at[:di, :do].set(
            jnp.asarray(w, weight_dtype))
        b_p = jnp.zeros((1, do_pad), jnp.float32).at[:, :do].set(
            jnp.asarray(b, jnp.float32).reshape(1, do))
        padded.append((w_p, b_p))
        in_pad = do_pad
    d_last_pad = in_pad
    max_w_pad = max([d0_pad] + [w.shape[1] for (w, _) in padded])

    # ---- VMEM budgeting (per core; v7x = 64 MiB vs 128 MiB on v5e/v6e) -----
    capacity = _vmem_capacity_bytes()
    act_budget = int(0.70 * capacity)
    weight_budget = int(0.50 * capacity)
    wb_buf_factor = 1 if _CAN_SINGLE_BUFFER else 2

    def _wb_bytes(layer_group):
        return wb_buf_factor * sum(
            w.size * w.dtype.itemsize + b.size * b.dtype.itemsize
            for (w, b) in layer_group)

    # v7x fallback: split the layer stack into chunks whose resident weights
    # fit the budget; typically a single chunk on v5e/v6e.
    chunks, cur = [], []
    for i in range(len(padded)):
        cur.append(i)
        if len(cur) > 1 and _wb_bytes([padded[j] for j in cur]) > weight_budget:
            chunks.append(cur[:-1])
            cur = [i]
    if cur:
        chunks.append(cur)

    max_chunk_wb = max(_wb_bytes([padded[j] for j in c]) for c in chunks)
    # per-row VMEM: double-buffered in/out tiles + elementwise working set.
    per_row_bytes = (2 * d0_pad + 2 * d_last_pad + 6 * max_w_pad) * 4

    def apply(x):
        m, d_in = x.shape
        assert d_in == d_in0, "input feature dim mismatch"

        tile_m = _pick_tile_m(m, act_budget, max_chunk_wb, per_row_bytes)
        m_pad = _round_up(m, tile_m)
        grid = (m_pad // tile_m,)

        x_p = jnp.zeros((m_pad, d0_pad), jnp.float32).at[:m, :d_in0].set(
            x.astype(jnp.float32))

        def run_chunk(act, chunk_params, chunk_flags, single_buffer):
            c_in_pad = chunk_params[0][0].shape[0]
            c_out_pad = chunk_params[-1][0].shape[1]

            def resident(shape):
                # Grid-invariant block: loaded into VMEM once, resident across
                # all grid steps. Single-buffered where supported (the index
                # never changes -> double-buffering only doubles footprint).
                if single_buffer:
                    return pl.BlockSpec(shape, lambda i: (0, 0),
                                        pipeline_mode=pl.Buffered(1))
                return pl.BlockSpec(shape, lambda i: (0, 0))

            in_specs = [pl.BlockSpec((tile_m, c_in_pad), lambda i: (i, 0))]
            flat = []
            for (w_p, b_p) in chunk_params:
                in_specs.append(resident(w_p.shape))
                in_specs.append(resident(b_p.shape))
                flat.extend([w_p, b_p])

            wb_res = sum(w.size * w.dtype.itemsize + b.size * b.dtype.itemsize
                         for (w, b) in chunk_params)
            wb_res *= 1 if single_buffer else 2
            act_res = (2 * tile_m * c_in_pad + 2 * tile_m * c_out_pad
                       + 6 * tile_m * max_w_pad) * 4
            vmem_limit = int(min(max(int(1.25 * (wb_res + act_res)),
                                     32 * 1024 * 1024),
                                 int(0.92 * capacity)))

            flops = 2 * m_pad * sum(w.shape[0] * w.shape[1]
                                    for (w, _) in chunk_params)
            transc = m_pad * sum(w.shape[1] for (w, _) in chunk_params)
            bytes_acc = (act.size * act.dtype.itemsize
                         + sum(w.size * w.dtype.itemsize
                               + b.size * b.dtype.itemsize
                               for (w, b) in chunk_params)
                         + m_pad * c_out_pad * 4)

            kernel = functools.partial(_fused_ff_kernel,
                                       shortcut_flags=chunk_flags)
            return pl.pallas_call(
                kernel,
                out_shape=jax.ShapeDtypeStruct((m_pad, c_out_pad), jnp.float32),
                grid=grid,
                in_specs=in_specs,
                out_specs=pl.BlockSpec((tile_m, c_out_pad), lambda i: (i, 0)),
                compiler_params=pltpu.CompilerParams(
                    dimension_semantics=("parallel",),
                    vmem_limit_bytes=vmem_limit,
                ),
                cost_estimate=pl.CostEstimate(
                    flops=int(flops),
                    transcendentals=int(transc),
                    bytes_accessed=int(bytes_acc),
                ),
            )(act, *flat)

        act = x_p
        for chunk in chunks:
            chunk_params = [padded[j] for j in chunk]
            chunk_flags = tuple(shortcut_flags[j] for j in chunk)
            if _CAN_SINGLE_BUFFER:
                try:
                    act = run_chunk(act, chunk_params, chunk_flags, True)
                    continue
                except Exception:
                    pass  # fall back to default (double) buffering
            act = run_chunk(act, chunk_params, chunk_flags, False)

        return act[:m, :d_out_last].astype(x.dtype)

    return apply


def init_params(key, layer_sizes):
    """Deterministic synthetic parameters (shapes match nn.Linear per layer)."""
    params = []
    for i in range(len(layer_sizes) - 1):
        d_in, d_out = layer_sizes[i], layer_sizes[i + 1]
        key, kw, kb = jax.random.split(key, 3)
        bound = 1.0 / jnp.sqrt(jnp.float32(d_in))
        w = jax.random.uniform(kw, (d_in, d_out), jnp.float32, -bound, bound)
        b = jax.random.uniform(kb, (1, d_out), jnp.float32, -bound, bound)
        params.append((w, b))
    return params


if __name__ == "__main__":
    # Small shapes consistent with the module: batch of 8 vectors, hidden=32,
    # final projection to 1 (last layer has no shortcut since shapes differ).
    layer_sizes = [32, 32, 32, 32, 1]
    use_shortcut = True

    key = jax.random.PRNGKey(0)
    key, kx = jax.random.split(key)
    x = jax.random.normal(kx, (8, layer_sizes[0]), jnp.float32)
    params = init_params(key, layer_sizes)

    # Padding / casting of the parameter stack happens once here (hoisted).
    forward = make_deep_feed_forward(params, use_shortcut,
                                     weight_dtype=jnp.float32)
    out = jax.block_until_ready(forward(x))

    # Pure-JAX reference check (same math, no Pallas).
    def ref_forward(x, params, use_shortcut):
        c = 0.7978845608028654
        for w, b in params:
            y = x @ w + b.reshape(1, -1)
            g = 0.5 * y * (1.0 + jnp.tanh(c * (y + 0.044715 * y ** 3)))
            x = x + g if (use_shortcut and x.shape == g.shape) else g
        return x

    ref = ref_forward(x, params, use_shortcut)
    assert out.shape == (8, 1)
    assert jnp.allclose(out, ref, atol=1e-5, rtol=1e-5)

    print("KERNEL_OK")
</pallas_src>

<mosaic_0001>
module attributes {stable_mosaic.version = 11 : i64} {
  func.func @_fused_ff_kernel(%arg0: i32, %arg1: memref<8x128xf32, #tpu.memory_space<vmem>>, %arg2: memref<128x128xf32, #tpu.memory_space<vmem>>, %arg3: memref<1x128xf32, #tpu.memory_space<vmem>>, %arg4: memref<128x128xf32, #tpu.memory_space<vmem>>, %arg5: memref<1x128xf32, #tpu.memory_space<vmem>>, %arg6: memref<128x128xf32, #tpu.memory_space<vmem>>, %arg7: memref<1x128xf32, #tpu.memory_space<vmem>>, %arg8: memref<128x128xf32, #tpu.memory_space<vmem>>, %arg9: memref<1x128xf32, #tpu.memory_space<vmem>>, %arg10: memref<8x128xf32, #tpu.memory_space<vmem>>) attributes {dimension_semantics = [#tpu.dimension_semantics<parallel>], iteration_bounds = array<i64: 1>, scalar_prefetch = 0 : i64, scratch_operands = 0 : i64, tpu.core_type = #tpu.core_type<tc>, window_params = [{transform_indices = @transform_0, window_bounds = array<i64: 8, 128>}, {pipeline_mode = #tpu.pipeline_mode<synchronous>, transform_indices = @transform_1, window_bounds = array<i64: 128, 128>}, {pipeline_mode = #tpu.pipeline_mode<synchronous>, transform_indices = @transform_2, window_bounds = array<i64: 1, 128>}, {pipeline_mode = #tpu.pipeline_mode<synchronous>, transform_indices = @transform_3, window_bounds = array<i64: 128, 128>}, {pipeline_mode = #tpu.pipeline_mode<synchronous>, transform_indices = @transform_4, window_bounds = array<i64: 1, 128>}, {pipeline_mode = #tpu.pipeline_mode<synchronous>, transform_indices = @transform_5, window_bounds = array<i64: 128, 128>}, {pipeline_mode = #tpu.pipeline_mode<synchronous>, transform_indices = @transform_6, window_bounds = array<i64: 1, 128>}, {pipeline_mode = #tpu.pipeline_mode<synchronous>, transform_indices = @transform_7, window_bounds = array<i64: 128, 128>}, {pipeline_mode = #tpu.pipeline_mode<synchronous>, transform_indices = @transform_8, window_bounds = array<i64: 1, 128>}, {transform_indices = @transform_9, window_bounds = array<i64: 8, 128>}]} {
    %c0 = arith.constant 0 : index
    %c0_0 = arith.constant 0 : index
    %0 = vector.load %arg1[%c0, %c0_0] : memref<8x128xf32, #tpu.memory_space<vmem>>, vector<8x128xf32>
    %c0_1 = arith.constant 0 : index
    %c0_2 = arith.constant 0 : index
    %1 = vector.load %arg2[%c0_1, %c0_2] : memref<128x128xf32, #tpu.memory_space<vmem>>, vector<128x128xf32>
    %c0_3 = arith.constant 0 : index
    %c0_4 = arith.constant 0 : index
    %2 = vector.load %arg3[%c0_3, %c0_4] : memref<1x128xf32, #tpu.memory_space<vmem>>, vector<1x128xf32>
    %cst = arith.constant dense<0.000000e+00> : vector<8x128xf32>
    %3 = tpu.matmul %0, %1, %cst {dimension_numbers = #tpu.dot_dimension_numbers<[1], [0], [0], [1], [0, 0, 1, 1], [], []>} : vector<8x128xf32>, vector<128x128xf32>, vector<8x128xf32> -> vector<8x128xf32>
    %4 = vector.broadcast %2 : vector<1x128xf32> to vector<8x128xf32>
    %5 = arith.addf %3, %4 : vector<8x128xf32>
    %6 = arith.mulf %5, %5 : vector<8x128xf32>
    %cst_5 = arith.constant 5.000000e-01 : f32
    %7 = vector.broadcast %cst_5 : f32 to vector<8x128xf32>
    %8 = arith.mulf %7, %5 : vector<8x128xf32>
    %cst_6 = arith.constant 0.0356774069 : f32
    %9 = vector.broadcast %cst_6 : f32 to vector<8x128xf32>
    %10 = arith.mulf %9, %6 : vector<8x128xf32>
    %cst_7 = arith.constant 0.797884583 : f32
    %11 = vector.broadcast %cst_7 : f32 to vector<8x128xf32>
    %12 = arith.addf %11, %10 : vector<8x128xf32>
    %13 = arith.mulf %5, %12 : vector<8x128xf32>
    %14 = math.tanh %13 : vector<8x128xf32>
    %cst_8 = arith.constant 1.000000e+00 : f32
    %15 = vector.broadcast %cst_8 : f32 to vector<8x128xf32>
    %16 = arith.addf %15, %14 : vector<8x128xf32>
    %17 = arith.mulf %8, %16 : vector<8x128xf32>
    %18 = arith.addf %0, %17 : vector<8x128xf32>
    %c0_9 = arith.constant 0 : index
    %c0_10 = arith.constant 0 : index
    %19 = vector.load %arg4[%c0_9, %c0_10] : memref<128x128xf32, #tpu.memory_space<vmem>>, vector<128x128xf32>
    %c0_11 = arith.constant 0 : index
    %c0_12 = arith.constant 0 : index
    %20 = vector.load %arg5[%c0_11, %c0_12] : memref<1x128xf32, #tpu.memory_space<vmem>>, vector<1x128xf32>
    %cst_13 = arith.constant dense<0.000000e+00> : vector<8x128xf32>
    %21 = tpu.matmul %18, %19, %cst_13 {dimension_numbers = #tpu.dot_dimension_numbers<[1], [0], [0], [1], [0, 0, 1, 1], [], []>} : vector<8x128xf32>, vector<128x128xf32>, vector<8x128xf32> -> vector<8x128xf32>
    %22 = vector.broadcast %20 : vector<1x128xf32> to vector<8x128xf32>
    %23 = arith.addf %21, %22 : vector<8x128xf32>
    %24 = arith.mulf %23, %23 : vector<8x128xf32>
    %cst_14 = arith.constant 5.000000e-01 : f32
    %25 = vector.broadcast %cst_14 : f32 to vector<8x128xf32>
    %26 = arith.mulf %25, %23 : vector<8x128xf32>
    %cst_15 = arith.constant 0.0356774069 : f32
    %27 = vector.broadcast %cst_15 : f32 to vector<8x128xf32>
    %28 = arith.mulf %27, %24 : vector<8x128xf32>
    %cst_16 = arith.constant 0.797884583 : f32
    %29 = vector.broadcast %cst_16 : f32 to vector<8x128xf32>
    %30 = arith.addf %29, %28 : vector<8x128xf32>
    %31 = arith.mulf %23, %30 : vector<8x128xf32>
    %32 = math.tanh %31 : vector<8x128xf32>
    %cst_17 = arith.constant 1.000000e+00 : f32
    %33 = vector.broadcast %cst_17 : f32 to vector<8x128xf32>
    %34 = arith.addf %33, %32 : vector<8x128xf32>
    %35 = arith.mulf %26, %34 : vector<8x128xf32>
    %36 = arith.addf %18, %35 : vector<8x128xf32>
    %c0_18 = arith.constant 0 : index
    %c0_19 = arith.constant 0 : index
    %37 = vector.load %arg6[%c0_18, %c0_19] : memref<128x128xf32, #tpu.memory_space<vmem>>, vector<128x128xf32>
    %c0_20 = arith.constant 0 : index
    %c0_21 = arith.constant 0 : index
    %38 = vector.load %arg7[%c0_20, %c0_21] : memref<1x128xf32, #tpu.memory_space<vmem>>, vector<1x128xf32>
    %cst_22 = arith.constant dense<0.000000e+00> : vector<8x128xf32>
    %39 = tpu.matmul %36, %37, %cst_22 {dimension_numbers = #tpu.dot_dimension_numbers<[1], [0], [0], [1], [0, 0, 1, 1], [], []>} : vector<8x128xf32>, vector<128x128xf32>, vector<8x128xf32> -> vector<8x128xf32>
    %40 = vector.broadcast %38 : vector<1x128xf32> to vector<8x128xf32>
    %41 = arith.addf %39, %40 : vector<8x128xf32>
    %42 = arith.mulf %41, %41 : vector<8x128xf32>
    %cst_23 = arith.constant 5.000000e-01 : f32
    %43 = vector.broadcast %cst_23 : f32 to vector<8x128xf32>
    %44 = arith.mulf %43, %41 : vector<8x128xf32>
    %cst_24 = arith.constant 0.0356774069 : f32
    %45 = vector.broadcast %cst_24 : f32 to vector<8x128xf32>
    %46 = arith.mulf %45, %42 : vector<8x128xf32>
    %cst_25 = arith.constant 0.797884583 : f32
    %47 = vector.broadcast %cst_25 : f32 to vector<8x128xf32>
    %48 = arith.addf %47, %46 : vector<8x128xf32>
    %49 = arith.mulf %41, %48 : vector<8x128xf32>
    %50 = math.tanh %49 : vector<8x128xf32>
    %cst_26 = arith.constant 1.000000e+00 : f32
    %51 = vector.broadcast %cst_26 : f32 to vector<8x128xf32>
    %52 = arith.addf %51, %50 : vector<8x128xf32>
    %53 = arith.mulf %44, %52 : vector<8x128xf32>
    %54 = arith.addf %36, %53 : vector<8x128xf32>
    %c0_27 = arith.constant 0 : index
    %c0_28 = arith.constant 0 : index
    %55 = vector.load %arg8[%c0_27, %c0_28] : memref<128x128xf32, #tpu.memory_space<vmem>>, vector<128x128xf32>
    %c0_29 = arith.constant 0 : index
    %c0_30 = arith.constant 0 : index
    %56 = vector.load %arg9[%c0_29, %c0_30] : memref<1x128xf32, #tpu.memory_space<vmem>>, vector<1x128xf32>
    %cst_31 = arith.constant dense<0.000000e+00> : vector<8x128xf32>
    %57 = tpu.matmul %54, %55, %cst_31 {dimension_numbers = #tpu.dot_dimension_numbers<[1], [0], [0], [1], [0, 0, 1, 1], [], []>} : vector<8x128xf32>, vector<128x128xf32>, vector<8x128xf32> -> vector<8x128xf32>
    %58 = vector.broadcast %56 : vector<1x128xf32> to vector<8x128xf32>
    %59 = arith.addf %57, %58 : vector<8x128xf32>
    %60 = arith.mulf %59, %59 : vector<8x128xf32>
    %cst_32 = arith.constant 5.000000e-01 : f32
    %61 = vector.broadcast %cst_32 : f32 to vector<8x128xf32>
    %62 = arith.mulf %61, %59 : vector<8x128xf32>
    %cst_33 = arith.constant 0.0356774069 : f32
    %63 = vector.broadcast %cst_33 : f32 to vector<8x128xf32>
    %64 = arith.mulf %63, %60 : vector<8x128xf32>
    %cst_34 = arith.constant 0.797884583 : f32
    %65 = vector.broadcast %cst_34 : f32 to vector<8x128xf32>
    %66 = arith.addf %65, %64 : vector<8x128xf32>
    %67 = arith.mulf %59, %66 : vector<8x128xf32>
    %68 = math.tanh %67 : vector<8x128xf32>
    %cst_35 = arith.constant 1.000000e+00 : f32
    %69 = vector.broadcast %cst_35 : f32 to vector<8x128xf32>
    %70 = arith.addf %69, %68 : vector<8x128xf32>
    %71 = arith.mulf %62, %70 : vector<8x128xf32>
    %c0_36 = arith.constant 0 : index
    %c0_37 = arith.constant 0 : index
    %72 = vector.load %arg10[%c0_36, %c0_37] : memref<8x128xf32, #tpu.memory_space<vmem>>, vector<8x128xf32>
    tpu.vector_store %arg10[%c0_36, %c0_37], %71 {strides = array<i32>} : memref<8x128xf32, #tpu.memory_space<vmem>>, vector<8x128xf32>,
    return
  }
  func.func @transform_0(%arg0: i32) -> (i32, i32) {
    %c0_i32 = arith.constant 0 : i32
    %c0_i32_0 = arith.constant 0 : i32
    return %arg0, %c0_i32 : i32, i32
  }
  func.func @transform_1(%arg0: i32) -> (i32, i32) {
    %c0_i32 = arith.constant 0 : i32
    %c0_i32_0 = arith.constant 0 : i32
    %c0_i32_1 = arith.constant 0 : i32
    return %c0_i32, %c0_i32_0 : i32, i32
  }
  func.func @transform_2(%arg0: i32) -> (i32, i32) {
    %c0_i32 = arith.constant 0 : i32
    %c0_i32_0 = arith.constant 0 : i32
    %c0_i32_1 = arith.constant 0 : i32
    return %c0_i32, %c0_i32_0 : i32, i32
  }
  func.func @transform_3(%arg0: i32) -> (i32, i32) {
    %c0_i32 = arith.constant 0 : i32
    %c0_i32_0 = arith.constant 0 : i32
    %c0_i32_1 = arith.constant 0 : i32
    return %c0_i32, %c0_i32_0 : i32, i32
  }
  func.func @transform_4(%arg0: i32) -> (i32, i32) {
    %c0_i32 = arith.constant 0 : i32
    %c0_i32_0 = arith.constant 0 : i32
    %c0_i32_1 = arith.constant 0 : i32
    return %c0_i32, %c0_i32_0 : i32, i32
  }
  func.func @transform_5(%arg0: i32) -> (i32, i32) {
    %c0_i32 = arith.constant 0 : i32
    %c0_i32_0 = arith.constant 0 : i32
    %c0_i32_1 = arith.constant 0 : i32
    return %c0_i32, %c0_i32_0 : i32, i32
  }
  func.func @transform_6(%arg0: i32) -> (i32, i32) {
    %c0_i32 = arith.constant 0 : i32
    %c0_i32_0 = arith.constant 0 : i32
    %c0_i32_1 = arith.constant 0 : i32
    return %c0_i32, %c0_i32_0 : i32, i32
  }
  func.func @transform_7(%arg0: i32) -> (i32, i32) {
    %c0_i32 = arith.constant 0 : i32
    %c0_i32_0 = arith.constant 0 : i32
    %c0_i32_1 = arith.constant 0 : i32
    return %c0_i32, %c0_i32_0 : i32, i32
  }
  func.func @transform_8(%arg0: i32) -> (i32, i32) {
    %c0_i32 = arith.constant 0 : i32
    %c0_i32_0 = arith.constant 0 : i32
    %c0_i32_1 = arith.constant 0 : i32
    return %c0_i32, %c0_i32_0 : i32, i32
  }
  func.func @transform_9(%arg0: i32) -> (i32, i32) {
    %c0_i32 = arith.constant 0 : i32
    %c0_i32_0 = arith.constant 0 : i32
    return %arg0, %c0_i32 : i32, i32
  }
}

module attributes {stable_mosaic.version = 11 : i64} {
  func.func @_fused_ff_kernel(%arg0: i32, %arg1: memref<8x128xf32, #tpu.memory_space<vmem>>, %arg2: memref<128x128xf32, #tpu.memory_space<vmem>>, %arg3: memref<1x128xf32, #tpu.memory_space<vmem>>, %arg4: memref<128x128xf32, #tpu.memory_space<vmem>>, %arg5: memref<1x128xf32, #tpu.memory_space<vmem>>, %arg6: memref<128x128xf32, #tpu.memory_space<vmem>>, %arg7: memref<1x128xf32, #tpu.memory_space<vmem>>, %arg8: memref<128x128xf32, #tpu.memory_space<vmem>>, %arg9: memref<1x128xf32, #tpu.memory_space<vmem>>, %arg10: memref<8x128xf32, #tpu.memory_space<vmem>>) attributes {dimension_semantics = [#tpu.dimension_semantics<parallel>], iteration_bounds = array<i64: 1>, scalar_prefetch = 0 : i64, scratch_operands = 0 : i64, tpu.core_type = #tpu.core_type<tc>, window_params = [{transform_indices = @transform_0, window_bounds = array<i64: 8, 128>}, {pipeline_mode = #tpu.pipeline_mode<synchronous>, transform_indices = @transform_1, window_bounds = array<i64: 128, 128>}, {pipeline_mode = #tpu.pipeline_mode<synchronous>, transform_indices = @transform_2, window_bounds = array<i64: 1, 128>}, {pipeline_mode = #tpu.pipeline_mode<synchronous>, transform_indices = @transform_3, window_bounds = array<i64: 128, 128>}, {pipeline_mode = #tpu.pipeline_mode<synchronous>, transform_indices = @transform_4, window_bounds = array<i64: 1, 128>}, {pipeline_mode = #tpu.pipeline_mode<synchronous>, transform_indices = @transform_5, window_bounds = array<i64: 128, 128>}, {pipeline_mode = #tpu.pipeline_mode<synchronous>, transform_indices = @transform_6, window_bounds = array<i64: 1, 128>}, {pipeline_mode = #tpu.pipeline_mode<synchronous>, transform_indices = @transform_7, window_bounds = array<i64: 128, 128>}, {pipeline_mode = #tpu.pipeline_mode<synchronous>, transform_indices = @transform_8, window_bounds = array<i64: 1, 128>}, {transform_indices = @transform_9, window_bounds = array<i64: 8, 128>}]} {
    %c0 = arith.constant 0 : index
    %c0_0 = arith.constant 0 : index
    %0 = vector.load %arg1[%c0, %c0_0] : memref<8x128xf32, #tpu.memory_space<vmem>>, vector<8x128xf32>
    %c0_1 = arith.constant 0 : index
    %c0_2 = arith.constant 0 : index
    %1 = vector.load %arg2[%c0_1, %c0_2] : memref<128x128xf32, #tpu.memory_space<vmem>>, vector<128x128xf32>
    %c0_3 = arith.constant 0 : index
    %c0_4 = arith.constant 0 : index
    %2 = vector.load %arg3[%c0_3, %c0_4] : memref<1x128xf32, #tpu.memory_space<vmem>>, vector<1x128xf32>
    %cst = arith.constant dense<0.000000e+00> : vector<8x128xf32>
    %3 = tpu.matmul %0, %1, %cst {dimension_numbers = #tpu.dot_dimension_numbers<[1], [0], [0], [1], [0, 0, 1, 1], [], []>} : vector<8x128xf32>, vector<128x128xf32>, vector<8x128xf32> -> vector<8x128xf32>
    %4 = vector.broadcast %2 : vector<1x128xf32> to vector<8x128xf32>
    %5 = arith.addf %3, %4 : vector<8x128xf32>
    %6 = arith.mulf %5, %5 : vector<8x128xf32>
    %cst_5 = arith.constant 5.000000e-01 : f32
    %7 = vector.broadcast %cst_5 : f32 to vector<8x128xf32>
    %8 = arith.mulf %7, %5 : vector<8x128xf32>
    %cst_6 = arith.constant 0.0356774069 : f32
    %9 = vector.broadcast %cst_6 : f32 to vector<8x128xf32>
    %10 = arith.mulf %9, %6 : vector<8x128xf32>
    %cst_7 = arith.constant 0.797884583 : f32
    %11 = vector.broadcast %cst_7 : f32 to vector<8x128xf32>
    %12 = arith.addf %11, %10 : vector<8x128xf32>
    %13 = arith.mulf %5, %12 : vector<8x128xf32>
    %14 = math.tanh %13 : vector<8x128xf32>
    %cst_8 = arith.constant 1.000000e+00 : f32
    %15 = vector.broadcast %cst_8 : f32 to vector<8x128xf32>
    %16 = arith.addf %15, %14 : vector<8x128xf32>
    %17 = arith.mulf %8, %16 : vector<8x128xf32>
    %18 = arith.addf %0, %17 : vector<8x128xf32>
    %c0_9 = arith.constant 0 : index
    %c0_10 = arith.constant 0 : index
    %19 = vector.load %arg4[%c0_9, %c0_10] : memref<128x128xf32, #tpu.memory_space<vmem>>, vector<128x128xf32>
    %c0_11 = arith.constant 0 : index
    %c0_12 = arith.constant 0 : index
    %20 = vector.load %arg5[%c0_11, %c0_12] : memref<1x128xf32, #tpu.memory_space<vmem>>, vector<1x128xf32>
    %cst_13 = arith.constant dense<0.000000e+00> : vector<8x128xf32>
    %21 = tpu.matmul %18, %19, %cst_13 {dimension_numbers = #tpu.dot_dimension_numbers<[1], [0], [0], [1], [0, 0, 1, 1], [], []>} : vector<8x128xf32>, vector<128x128xf32>, vector<8x128xf32> -> vector<8x128xf32>
    %22 = vector.broadcast %20 : vector<1x128xf32> to vector<8x128xf32>
    %23 = arith.addf %21, %22 : vector<8x128xf32>
    %24 = arith.mulf %23, %23 : vector<8x128xf32>
    %cst_14 = arith.constant 5.000000e-01 : f32
    %25 = vector.broadcast %cst_14 : f32 to vector<8x128xf32>
    %26 = arith.mulf %25, %23 : vector<8x128xf32>
    %cst_15 = arith.constant 0.0356774069 : f32
    %27 = vector.broadcast %cst_15 : f32 to vector<8x128xf32>
    %28 = arith.mulf %27, %24 : vector<8x128xf32>
    %cst_16 = arith.constant 0.797884583 : f32
    %29 = vector.broadcast %cst_16 : f32 to vector<8x128xf32>
    %30 = arith.addf %29, %28 : vector<8x128xf32>
    %31 = arith.mulf %23, %30 : vector<8x128xf32>
    %32 = math.tanh %31 : vector<8x128xf32>
    %cst_17 = arith.constant 1.000000e+00 : f32
    %33 = vector.broadcast %cst_17 : f32 to vector<8x128xf32>
    %34 = arith.addf %33, %32 : vector<8x128xf32>
    %35 = arith.mulf %26, %34 : vector<8x128xf32>
    %36 = arith.addf %18, %35 : vector<8x128xf32>
    %c0_18 = arith.constant 0 : index
    %c0_19 = arith.constant 0 : index
    %37 = vector.load %arg6[%c0_18, %c0_19] : memref<128x128xf32, #tpu.memory_space<vmem>>, vector<128x128xf32>
    %c0_20 = arith.constant 0 : index
    %c0_21 = arith.constant 0 : index
    %38 = vector.load %arg7[%c0_20, %c0_21] : memref<1x128xf32, #tpu.memory_space<vmem>>, vector<1x128xf32>
    %cst_22 = arith.constant dense<0.000000e+00> : vector<8x128xf32>
    %39 = tpu.matmul %36, %37, %cst_22 {dimension_numbers = #tpu.dot_dimension_numbers<[1], [0], [0], [1], [0, 0, 1, 1], [], []>} : vector<8x128xf32>, vector<128x128xf32>, vector<8x128xf32> -> vector<8x128xf32>
    %40 = vector.broadcast %38 : vector<1x128xf32> to vector<8x128xf32>
    %41 = arith.addf %39, %40 : vector<8x128xf32>
    %42 = arith.mulf %41, %41 : vector<8x128xf32>
    %cst_23 = arith.constant 5.000000e-01 : f32
    %43 = vector.broadcast %cst_23 : f32 to vector<8x128xf32>
    %44 = arith.mulf %43, %41 : vector<8x128xf32>
    %cst_24 = arith.constant 0.0356774069 : f32
    %45 = vector.broadcast %cst_24 : f32 to vector<8x128xf32>
    %46 = arith.mulf %45, %42 : vector<8x128xf32>
    %cst_25 = arith.constant 0.797884583 : f32
    %47 = vector.broadcast %cst_25 : f32 to vector<8x128xf32>
    %48 = arith.addf %47, %46 : vector<8x128xf32>
    %49 = arith.mulf %41, %48 : vector<8x128xf32>
    %50 = math.tanh %49 : vector<8x128xf32>
    %cst_26 = arith.constant 1.000000e+00 : f32
    %51 = vector.broadcast %cst_26 : f32 to vector<8x128xf32>
    %52 = arith.addf %51, %50 : vector<8x128xf32>
    %53 = arith.mulf %44, %52 : vector<8x128xf32>
    %54 = arith.addf %36, %53 : vector<8x128xf32>
    %c0_27 = arith.constant 0 : index
    %c0_28 = arith.constant 0 : index
    %55 = vector.load %arg8[%c0_27, %c0_28] : memref<128x128xf32, #tpu.memory_space<vmem>>, vector<128x128xf32>
    %c0_29 = arith.constant 0 : index
    %c0_30 = arith.constant 0 : index
    %56 = vector.load %arg9[%c0_29, %c0_30] : memref<1x128xf32, #tpu.memory_space<vmem>>, vector<1x128xf32>
    %cst_31 = arith.constant dense<0.000000e+00> : vector<8x128xf32>
    %57 = tpu.matmul %54, %55, %cst_31 {dimension_numbers = #tpu.dot_dimension_numbers<[1], [0], [0], [1], [0, 0, 1, 1], [], []>} : vector<8x128xf32>, vector<128x128xf32>, vector<8x128xf32> -> vector<8x128xf32>
    %58 = vector.broadcast %56 : vector<1x128xf32> to vector<8x128xf32>
    %59 = arith.addf %57, %58 : vector<8x128xf32>
    %60 = arith.mulf %59, %59 : vector<8x128xf32>
    %cst_32 = arith.constant 5.000000e-01 : f32
    %61 = vector.broadcast %cst_32 : f32 to vector<8x128xf32>
    %62 = arith.mulf %61, %59 : vector<8x128xf32>
    %cst_33 = arith.constant 0.0356774069 : f32
    %63 = vector.broadcast %cst_33 : f32 to vector<8x128xf32>
    %64 = arith.mulf %63, %60 : vector<8x128xf32>
    %cst_34 = arith.constant 0.797884583 : f32
    %65 = vector.broadcast %cst_34 : f32 to vector<8x128xf32>
    %66 = arith.addf %65, %64 : vector<8x128xf32>
    %67 = arith.mulf %59, %66 : vector<8x128xf32>
    %68 = math.tanh %67 : vector<8x128xf32>
    %cst_35 = arith.constant 1.000000e+00 : f32
    %69 = vector.broadcast %cst_35 : f32 to vector<8x128xf32>
    %70 = arith.addf %69, %68 : vector<8x128xf32>
    %71 = arith.mulf %62, %70 : vector<8x128xf32>
    %c0_36 = arith.constant 0 : index
    %c0_37 = arith.constant 0 : index
    %72 = vector.load %arg10[%c0_36, %c0_37] : memref<8x128xf32, #tpu.memory_space<vmem>>, vector<8x128xf32>
    tpu.vector_store %arg10[%c0_36, %c0_37], %71 {strides = array<i32>} : memref<8x128xf32, #tpu.memory_space<vmem>>, vector<8x128xf32>,
    return
  }
  func.func @transform_0(%arg0: i32) -> (i32, i32) {
    %c0_i32 = arith.constant 0 : i32
    %c0_i32_0 = arith.constant 0 : i32
    return %arg0, %c0_i32 : i32, i32
  }
  func.func @transform_1(%arg0: i32) -> (i32, i32) {
    %c0_i32 = arith.constant 0 : i32
    %c0_i32_0 = arith.constant 0 : i32
    %c0_i32_1 = arith.constant 0 : i32
    return %c0_i32, %c0_i32_0 : i32, i32
  }
  func.func @transform_2(%arg0: i32) -> (i32, i32) {
    %c0_i32 = arith.constant 0 : i32
    %c0_i32_0 = arith.constant 0 : i32
    %c0_i32_1 = arith.constant 0 : i32
    return %c0_i32, %c0_i32_0 : i32, i32
  }
  func.func @transform_3(%arg0: i32) -> (i32, i32) {
    %c0_i32 = arith.constant 0 : i32
    %c0_i32_0 = arith.constant 0 : i32
    %c0_i32_1 = arith.constant 0 : i32
    return %c0_i32, %c0_i32_0 : i32, i32
  }
  func.func @transform_4(%arg0: i32) -> (i32, i32) {
    %c0_i32 = arith.constant 0 : i32
    %c0_i32_0 = arith.constant 0 : i32
    %c0_i32_1 = arith.constant 0 : i32
    return %c0_i32, %c0_i32_0 : i32, i32
  }
  func.func @transform_5(%arg0: i32) -> (i32, i32) {
    %c0_i32 = arith.constant 0 : i32
    %c0_i32_0 = arith.constant 0 : i32
    %c0_i32_1 = arith.constant 0 : i32
    return %c0_i32, %c0_i32_0 : i32, i32
  }
  func.func @transform_6(%arg0: i32) -> (i32, i32) {
    %c0_i32 = arith.constant 0 : i32
    %c0_i32_0 = arith.constant 0 : i32
    %c0_i32_1 = arith.constant 0 : i32
    return %c0_i32, %c0_i32_0 : i32, i32
  }
  func.func @transform_7(%arg0: i32) -> (i32, i32) {
    %c0_i32 = arith.constant 0 : i32
    %c0_i32_0 = arith.constant 0 : i32
    %c0_i32_1 = arith.constant 0 : i32
    return %c0_i32, %c0_i32_0 : i32, i32
  }
  func.func @transform_8(%arg0: i32) -> (i32, i32) {
    %c0_i32 = arith.constant 0 : i32
    %c0_i32_0 = arith.constant 0 : i32
    %c0_i32_1 = arith.constant 0 : i32
    return %c0_i32, %c0_i32_0 : i32, i32
  }
  func.func @transform_9(%arg0: i32) -> (i32, i32) {
    %c0_i32 = arith.constant 0 : i32
    %c0_i32_0 = arith.constant 0 : i32
    return %arg0, %c0_i32 : i32, i32
  }
}

</mosaic_0001>

<llo_original>
// kernel: tpu_custom_call.1
$region0: #{tpu_custom_call.1}
  #allocation0 [shape = 'u32[]', space=smem, size = 0x4, offset = 0x4, fixed_abs, tag = 'smem constant byte address 0x4 - core index']
  #allocation1 [shape = 'u32[72,128]{1,0:T(1,128)}', space=vmem, size = 0x9000, scoped, tag = 'internal scratch']
  %s0 = inlined_call_operand.hbm [shape: f32[8,128], index: 0, kind: input, shape index: {}]
  %s1 = inlined_call_operand.hbm [shape: f32[128,128], index: 1, kind: input, shape index: {}]
  %s2 = inlined_call_operand.vmem [shape: f32[1,128], index: 2, kind: input, shape index: {}]
  %s3 = inlined_call_operand.hbm [shape: f32[128,128], index: 3, kind: input, shape index: {}]
  %s4 = inlined_call_operand.vmem [shape: f32[1,128], index: 4, kind: input, shape index: {}]
  %s5 = inlined_call_operand.hbm [shape: f32[128,128], index: 5, kind: input, shape index: {}]
  %s6 = inlined_call_operand.vmem [shape: f32[1,128], index: 6, kind: input, shape index: {}]
  %s7 = inlined_call_operand.hbm [shape: f32[128,128], index: 7, kind: input, shape index: {}]
  %s8 = inlined_call_operand.vmem [shape: f32[1,128], index: 8, kind: input, shape index: {}]
  %s9 = inlined_call_operand.hbm [shape: f32[8,128], index: 9, kind: output, shape index: {}]
  %s10 = sld [smem:[#allocation0]]
  $region66: #{tpu_custom_call.1} parent=0
    _
  %s12 = ssub.s32 1, %s10
  %s13 = scalar_select 0, %s12, %s10
  $region1: #{tpu_custom_call.1} parent=0
    #allocation2 [shape = 'u8[4096]{0}', space=vmem, size = 0x1000, scoped, tag = 'input window, operand 0, single buffered']
    #allocation3 [shape = 's32[1]{0}', space=sflag, size = 0x4, scoped, tag = 'scoped memory for tpu_custom_call.1']
    #allocation4 [shape = 's32[1]{0}', space=sflag, size = 0x4, scoped, tag = 'scoped memory for tpu_custom_call.1']
    #allocation5 [shape = 'u8[65536]{0}', space=vmem, size = 0x10000, scoped, tag = 'input window, operand 1, single buffered']
    #allocation6 [shape = 's32[1]{0}', space=sflag, size = 0x4, scoped, tag = 'scoped memory for tpu_custom_call.1']
    #allocation7 [shape = 'u8[65536]{0}', space=vmem, size = 0x10000, scoped, tag = 'input window, operand 3, single buffered']
    #allocation8 [shape = 'u8[65536]{0}', space=vmem, size = 0x10000, scoped, tag = 'input window, operand 5, single buffered']
    #allocation9 [shape = 's32[1]{0}', space=sflag, size = 0x4, scoped, tag = 'scoped memory for tpu_custom_call.1']
    #allocation10 [shape = 'u8[65536]{0}', space=vmem, size = 0x10000, scoped, tag = 'input window, operand 7, single buffered']
    #allocation11 [shape = 'u8[4096]{0}', space=vmem, size = 0x1000, scoped, tag = 'output window, operand 0, single buffered']
    %14 = vsyncpa [#allocation3], 0
    %15 = vsyncpa [#allocation6], 0
    %16 = vsyncpa [#allocation9], 0
    %17 = vsyncpa [#allocation4], 0
    // Predicated region
    $region2: #{tpu_custom_call.1} parent=1 // pred_check
      _
    $region3: #{tpu_custom_call.1} parent=1 // pred_check_branch
      %19 = sbr.rel (0) target = $region5
    $region4: #{tpu_custom_call.1} parent=1 // pred_region
      %21 = vsyncadd [#allocation3], 0
      %s23 = sshll.u32 %s0, 4
      %s24 = int_to_ptr.hbm [resolvable:$true] %s23
      %s25 = sshll.u32 [#allocation2], 4
      %s26 = int_to_ptr.vmem [resolvable:$true] %s25
      %28 = dma.hbm_to_vmem [thread:$0]  %s24, 128, %s26, [#allocation3]
    $region5: #{tpu_custom_call.1} parent=1 // pred_fallthru
      _
    // Predicated region
    $region6: #{tpu_custom_call.1} parent=1 // pred_check
      _
    $region7: #{tpu_custom_call.1} parent=1 // pred_check_branch
      %30 = sbr.rel (0) target = $region9
    $region8: #{tpu_custom_call.1} parent=1 // pred_region
      %32 = vsyncadd [#allocation6], 0
      %s33 = sshll.u32 %s1, 4
      %s34 = int_to_ptr.hbm [resolvable:$true] %s33
      %s35 = sshll.u32 [#allocation5], 4
      %s36 = int_to_ptr.vmem [resolvable:$true] %s35
      %41 = dma.hbm_to_vmem [thread:$0]  %s34, 2048, %s36, [#allocation6], 128, 128, 8
    $region9: #{tpu_custom_call.1} parent=1 // pred_fallthru
      _
    // Predicated region
    $region10: #{tpu_custom_call.1} parent=1 // pred_check
      _
    $region11: #{tpu_custom_call.1} parent=1 // pred_check_branch
      %43 = sbr.rel (0) target = $region13
    $region12: #{tpu_custom_call.1} parent=1 // pred_region
      _
    $region13: #{tpu_custom_call.1} parent=1 // pred_fallthru
      _
    // Predicated region
    $region14: #{tpu_custom_call.1} parent=1 // pred_check
      _
    $region15: #{tpu_custom_call.1} parent=1 // pred_check_branch
      %45 = sbr.rel (0) target = $region17
    $region16: #{tpu_custom_call.1} parent=1 // pred_region
      %47 = vsyncadd [#allocation6], 0
      %s48 = sshll.u32 %s3, 4
      %s49 = int_to_ptr.hbm [resolvable:$true] %s48
      %s50 = sshll.u32 [#allocation7], 4
      %s51 = int_to_ptr.vmem [resolvable:$true] %s50
      %56 = dma.hbm_to_vmem [thread:$0]  %s49, 2048, %s51, [#allocation6], 128, 128, 8
    $region17: #{tpu_custom_call.1} parent=1 // pred_fallthru
      _
    // Predicated region
    $region18: #{tpu_custom_call.1} parent=1 // pred_check
      _
    $region19: #{tpu_custom_call.1} parent=1 // pred_check_branch
      %58 = sbr.rel (0) target = $region21
    $region20: #{tpu_custom_call.1} parent=1 // pred_region
      _
    $region21: #{tpu_custom_call.1} parent=1 // pred_fallthru
      _
    // Predicated region
    $region22: #{tpu_custom_call.1} parent=1 // pred_check
      _
    $region23: #{tpu_custom_call.1} parent=1 // pred_check_branch
      %60 = sbr.rel (0) target = $region25
    $region24: #{tpu_custom_call.1} parent=1 // pred_region
      %62 = vsyncadd [#allocation9], 0
      %s63 = sshll.u32 %s5, 4
      %s64 = int_to_ptr.hbm [resolvable:$true] %s63
      %s65 = sshll.u32 [#allocation8], 4
      %s66 = int_to_ptr.vmem [resolvable:$true] %s65
      %71 = dma.hbm_to_vmem [thread:$0]  %s64, 2048, %s66, [#allocation9], 128, 128, 8
    $region25: #{tpu_custom_call.1} parent=1 // pred_fallthru
      _
    // Predicated region
    $region26: #{tpu_custom_call.1} parent=1 // pred_check
      _
    $region27: #{tpu_custom_call.1} parent=1 // pred_check_branch
      %73 = sbr.rel (0) target = $region29
    $region28: #{tpu_custom_call.1} parent=1 // pred_region
      _
    $region29: #{tpu_custom_call.1} parent=1 // pred_fallthru
      _
    // Predicated region
    $region30: #{tpu_custom_call.1} parent=1 // pred_check
      _
    $region31: #{tpu_custom_call.1} parent=1 // pred_check_branch
      %75 = sbr.rel (0) target = $region33
    $region32: #{tpu_custom_call.1} parent=1 // pred_region
      %77 = vsyncadd [#allocation9], 0
      %s78 = sshll.u32 %s7, 4
      %s79 = int_to_ptr.hbm [resolvable:$true] %s78
      %s80 = sshll.u32 [#allocation10], 4
      %s81 = int_to_ptr.vmem [resolvable:$true] %s80
      %86 = dma.hbm_to_vmem [thread:$0]  %s79, 2048, %s81, [#allocation9], 128, 128, 8
    $region33: #{tpu_custom_call.1} parent=1 // pred_fallthru
      _
    // Predicated region
    $region34: #{tpu_custom_call.1} parent=1 // pred_check
      _
    $region35: #{tpu_custom_call.1} parent=1 // pred_check_branch
      %88 = sbr.rel (0) target = $region37
    $region36: #{tpu_custom_call.1} parent=1 // pred_region
      _
    $region37: #{tpu_custom_call.1} parent=1 // pred_fallthru
      _
    // Predicated region
    $region38: #{tpu_custom_call.1} parent=1 // pred_check
      _
    $region39: #{tpu_custom_call.1} parent=1 // pred_check_branch
      %90 = sbr.rel (0) target = $region41
    $region40: #{tpu_custom_call.1} parent=1 // pred_region
      %92 = dma.done [#allocation3], 128
    $region41: #{tpu_custom_call.1} parent=1 // pred_fallthru
      _
    // Predicated region
    $region42: #{tpu_custom_call.1} parent=1 // pred_check
      _
    $region43: #{tpu_custom_call.1} parent=1 // pred_check_branch
      %94 = sbr.rel (0) target = $region45
    $region44: #{tpu_custom_call.1} parent=1 // pred_region
      %96 = dma.done [#allocation6], 2048
    $region45: #{tpu_custom_call.1} parent=1 // pred_fallthru
      _
    // Predicated region
    $region46: #{tpu_custom_call.1} parent=1 // pred_check
      _
    $region47: #{tpu_custom_call.1} parent=1 // pred_check_branch
      %98 = sbr.rel (0) target = $region49
    $region48: #{tpu_custom_call.1} parent=1 // pred_region
      %100 = dma.done [#allocation6], 2048
    $region49: #{tpu_custom_call.1} parent=1 // pred_fallthru
      _
    // Predicated region
    $region50: #{tpu_custom_call.1} parent=1 // pred_check
      _
    $region51: #{tpu_custom_call.1} parent=1 // pred_check_branch
      %102 = sbr.rel (0) target = $region53
    $region52: #{tpu_custom_call.1} parent=1 // pred_region
      %104 = dma.done [#allocation9], 2048
    $region53: #{tpu_custom_call.1} parent=1 // pred_fallthru
      _
    // Predicated region
    $region54: #{tpu_custom_call.1} parent=1 // pred_check
      _
    $region55: #{tpu_custom_call.1} parent=1 // pred_check_branch
      %106 = sbr.rel (0) target = $region57
    $region56: #{tpu_custom_call.1} parent=1 // pred_region
      %108 = dma.done [#allocation9], 2048
    $region57: #{tpu_custom_call.1} parent=1 // pred_fallthru
      _
    %v109 = vld [vmem:[#allocation2] sm:$0xff]
    %v110 = vld [vmem:[#allocation5] sm:$0xff]
    %v111 = vld [vmem:[#allocation5 + $0x8] sm:$0xff]
    %v112 = vld [vmem:[#allocation5 + $0x10] sm:$0xff]
    %v113 = vld [vmem:[#allocation5 + $0x18] sm:$0xff]
    %v114 = vld [vmem:[#allocation5 + $0x20] sm:$0xff]
    %v115 = vld [vmem:[#allocation5 + $0x28] sm:$0xff]
    %v116 = vld [vmem:[#allocation5 + $0x30] sm:$0xff]
    %v117 = vld [vmem:[#allocation5 + $0x38] sm:$0xff]
    %v118 = vld [vmem:[#allocation5 + $0x40] sm:$0xff]
    %v119 = vld [vmem:[#allocation5 + $0x48] sm:$0xff]
    %v120 = vld [vmem:[#allocation5 + $0x50] sm:$0xff]
    %v121 = vld [vmem:[#allocation5 + $0x58] sm:$0xff]
    %v122 = vld [vmem:[#allocation5 + $0x60] sm:$0xff]
    %v123 = vld [vmem:[#allocation5 + $0x68] sm:$0xff]
    %v124 = vld [vmem:[#allocation5 + $0x70] sm:$0xff]
    %v125 = vld [vmem:[#allocation5 + $0x78] sm:$0xff]
    %v126 = vld [vmem:[%s2] sm:$0x1]
    %v128 = vperm.slane %v126, 0
    %130 = vmatpush.msra.mxu0 %v125
    %131 = vmatpush.msra.mxu0 %v124
    %132 = vmatpush.msra.mxu0 %v123
    %133 = vmatpush.msra.mxu0 %v122
    %134 = vmatpush.msra.mxu0 %v121
    %135 = vmatpush.msra.mxu0 %v120
    %136 = vmatpush.msra.mxu0 %v119
    %137 = vmatpush.msra.mxu0 %v118
    %138 = vmatpush.msra.mxu0 %v117
    %139 = vmatpush.msra.mxu0 %v116
    %140 = vmatpush.msra.mxu0 %v115
    %141 = vmatpush.msra.mxu0 %v114
    %142 = vmatpush.msra.mxu0 %v113
    %143 = vmatpush.msra.mxu0 %v112
    %144 = vmatpush.msra.mxu0 %v111
    %145 = vmatpush.msra.mxu0 %v110
    %146 = vmatmul.f32.gmra.mxu0 %v109
    %v147 = vpop.f32.mrf.mxu0
    %v148 = vadd.f32 %v128, %v147
    %149 = vdwg.mxu0
    %v150 = vmul.f32 %v148, %v148
    %v151 = vmul.f32 %v148, 0.5
    %v152 = vmul.f32 %v150, 0.035677407
    %v153 = vadd.f32 %v152, 0.7978846
    %v154 = vmul.f32 %v148, %v153
    %v155 = vtanh.pop %v154
    %v156 = vadd.f32 %v155, 1.0
    %v157 = vmul.f32 %v151, %v156
    %v158 = vadd.f32 %v109, %v157
    %v159 = vld [vmem:[#allocation7] sm:$0xff]
    %v160 = vld [vmem:[#allocation7 + $0x8] sm:$0xff]
    %v161 = vld [vmem:[#allocation7 + $0x10] sm:$0xff]
    %v162 = vld [vmem:[#allocation7 + $0x18] sm:$0xff]
    %v163 = vld [vmem:[#allocation7 + $0x20] sm:$0xff]
    %v164 = vld [vmem:[#allocation7 + $0x28] sm:$0xff]
    %v165 = vld [vmem:[#allocation7 + $0x30] sm:$0xff]
    %v166 = vld [vmem:[#allocation7 + $0x38] sm:$0xff]
    %v167 = vld [vmem:[#allocation7 + $0x40] sm:$0xff]
    %v168 = vld [vmem:[#allocation7 + $0x48] sm:$0xff]
    %v169 = vld [vmem:[#allocation7 + $0x50] sm:$0xff]
    %v170 = vld [vmem:[#allocation7 + $0x58] sm:$0xff]
    %v171 = vld [vmem:[#allocation7 + $0x60] sm:$0xff]
    %v172 = vld [vmem:[#allocation7 + $0x68] sm:$0xff]
    %v173 = vld [vmem:[#allocation7 + $0x70] sm:$0xff]
    %v174 = vld [vmem:[#allocation7 + $0x78] sm:$0xff]
    %v175 = vld [vmem:[%s4] sm:$0x1]
    %v177 = vperm.slane %v175, 0
    %179 = vmatpush.msra.mxu0 %v174
    %180 = vmatpush.msra.mxu0 %v173
    %181 = vmatpush.msra.mxu0 %v172
    %182 = vmatpush.msra.mxu0 %v171
    %183 = vmatpush.msra.mxu0 %v170
    %184 = vmatpush.msra.mxu0 %v169
    %185 = vmatpush.msra.mxu0 %v168
    %186 = vmatpush.msra.mxu0 %v167
    %187 = vmatpush.msra.mxu0 %v166
    %188 = vmatpush.msra.mxu0 %v165
    %189 = vmatpush.msra.mxu0 %v164
    %190 = vmatpush.msra.mxu0 %v163
    %191 = vmatpush.msra.mxu0 %v162
    %192 = vmatpush.msra.mxu0 %v161
    %193 = vmatpush.msra.mxu0 %v160
    %194 = vmatpush.msra.mxu0 %v159
    %195 = vmatmul.f32.gmra.mxu0 %v158
    %v196 = vpop.f32.mrf.mxu0
    %v197 = vadd.f32 %v177, %v196
    %198 = vdwg.mxu0
    %v199 = vmul.f32 %v197, %v197
    %v200 = vmul.f32 %v197, 0.5
    %v201 = vmul.f32 %v199, 0.035677407
    %v202 = vadd.f32 %v201, 0.7978846
    %v203 = vmul.f32 %v197, %v202
    %v204 = vtanh.pop %v203
    %v205 = vadd.f32 %v204, 1.0
    %v206 = vmul.f32 %v200, %v205
    %v207 = vadd.f32 %v158, %v206
    %v208 = vld [vmem:[#allocation8] sm:$0xff]
    %v209 = vld [vmem:[#allocation8 + $0x8] sm:$0xff]
    %v210 = vld [vmem:[#allocation8 + $0x10] sm:$0xff]
    %v211 = vld [vmem:[#allocation8 + $0x18] sm:$0xff]
    %v212 = vld [vmem:[#allocation8 + $0x20] sm:$0xff]
    %v213 = vld [vmem:[#allocation8 + $0x28] sm:$0xff]
    %v214 = vld [vmem:[#allocation8 + $0x30] sm:$0xff]
    %v215 = vld [vmem:[#allocation8 + $0x38] sm:$0xff]
    %v216 = vld [vmem:[#allocation8 + $0x40] sm:$0xff]
    %v217 = vld [vmem:[#allocation8 + $0x48] sm:$0xff]
    %v218 = vld [vmem:[#allocation8 + $0x50] sm:$0xff]
    %v219 = vld [vmem:[#allocation8 + $0x58] sm:$0xff]
    %v220 = vld [vmem:[#allocation8 + $0x60] sm:$0xff]
    %v221 = vld [vmem:[#allocation8 + $0x68] sm:$0xff]
    %v222 = vld [vmem:[#allocation8 + $0x70] sm:$0xff]
    %v223 = vld [vmem:[#allocation8 + $0x78] sm:$0xff]
    %v224 = vld [vmem:[%s6] sm:$0x1]
    %v226 = vperm.slane %v224, 0
    %228 = vmatpush.msra.mxu0 %v223
    %229 = vmatpush.msra.mxu0 %v222
    %230 = vmatpush.msra.mxu0 %v221
    %231 = vmatpush.msra.mxu0 %v220
    %232 = vmatpush.msra.mxu0 %v219
    %233 = vmatpush.msra.mxu0 %v218
    %234 = vmatpush.msra.mxu0 %v217
    %235 = vmatpush.msra.mxu0 %v216
    %236 = vmatpush.msra.mxu0 %v215
    %237 = vmatpush.msra.mxu0 %v214
    %238 = vmatpush.msra.mxu0 %v213
    %239 = vmatpush.msra.mxu0 %v212
    %240 = vmatpush.msra.mxu0 %v211
    %241 = vmatpush.msra.mxu0 %v210
    %242 = vmatpush.msra.mxu0 %v209
    %243 = vmatpush.msra.mxu0 %v208
    %244 = vmatmul.f32.gmra.mxu0 %v207
    %v245 = vpop.f32.mrf.mxu0
    %v246 = vadd.f32 %v226, %v245
    %247 = vdwg.mxu0
    %v248 = vmul.f32 %v246, %v246
    %v249 = vmul.f32 %v246, 0.5
    %v250 = vmul.f32 %v248, 0.035677407
    %v251 = vadd.f32 %v250, 0.7978846
    %v252 = vmul.f32 %v246, %v251
    %v253 = vtanh.pop %v252
    %v254 = vadd.f32 %v253, 1.0
    %v255 = vmul.f32 %v249, %v254
    %v256 = vadd.f32 %v207, %v255
    %v257 = vld [vmem:[#allocation10] sm:$0xff]
    %v258 = vld [vmem:[#allocation10 + $0x8] sm:$0xff]
    %v259 = vld [vmem:[#allocation10 + $0x10] sm:$0xff]
    %v260 = vld [vmem:[#allocation10 + $0x18] sm:$0xff]
    %v261 = vld [vmem:[#allocation10 + $0x20] sm:$0xff]
    %v262 = vld [vmem:[#allocation10 + $0x28] sm:$0xff]
    %v263 = vld [vmem:[#allocation10 + $0x30] sm:$0xff]
    %v264 = vld [vmem:[#allocation10 + $0x38] sm:$0xff]
    %v265 = vld [vmem:[#allocation10 + $0x40] sm:$0xff]
    %v266 = vld [vmem:[#allocation10 + $0x48] sm:$0xff]
    %v267 = vld [vmem:[#allocation10 + $0x50] sm:$0xff]
    %v268 = vld [vmem:[#allocation10 + $0x58] sm:$0xff]
    %v269 = vld [vmem:[#allocation10 + $0x60] sm:$0xff]
    %v270 = vld [vmem:[#allocation10 + $0x68] sm:$0xff]
    %v271 = vld [vmem:[#allocation10 + $0x70] sm:$0xff]
    %v272 = vld [vmem:[#allocation10 + $0x78] sm:$0xff]
    %v273 = vld [vmem:[%s8] sm:$0x1]
    %v275 = vperm.slane %v273, 0
    %277 = vmatpush.msra.mxu0 %v272
    %278 = vmatpush.msra.mxu0 %v271
    %279 = vmatpush.msra.mxu0 %v270
    %280 = vmatpush.msra.mxu0 %v269
    %281 = vmatpush.msra.mxu0 %v268
    %282 = vmatpush.msra.mxu0 %v267
    %283 = vmatpush.msra.mxu0 %v266
    %284 = vmatpush.msra.mxu0 %v265
    %285 = vmatpush.msra.mxu0 %v264
    %286 = vmatpush.msra.mxu0 %v263
    %287 = vmatpush.msra.mxu0 %v262
    %288 = vmatpush.msra.mxu0 %v261
    %289 = vmatpush.msra.mxu0 %v260
    %290 = vmatpush.msra.mxu0 %v259
    %291 = vmatpush.msra.mxu0 %v258
    %292 = vmatpush.msra.mxu0 %v257
    %293 = vmatmul.f32.gmra.mxu0 %v256
    %v294 = vpop.f32.mrf.mxu0
    %v295 = vadd.f32 %v275, %v294
    %296 = vdwg.mxu0
    %v297 = vmul.f32 %v295, %v295
    %v298 = vmul.f32 %v295, 0.5
    %v299 = vmul.f32 %v297, 0.035677407
    %v300 = vadd.f32 %v299, 0.7978846
    %v301 = vmul.f32 %v295, %v300
    %v302 = vtanh.pop %v301
    %v303 = vadd.f32 %v302, 1.0
    %v304 = vmul.f32 %v298, %v303
    %305 = vst [vmem:[#allocation11] sm:$0xff] %v304
    // Predicated region
    $region58: #{tpu_custom_call.1} parent=1 // pred_check
      _
    $region59: #{tpu_custom_call.1} parent=1 // pred_check_branch
      %307 = sbr.rel (0) target = $region61
    $region60: #{tpu_custom_call.1} parent=1 // pred_region
      %309 = vsyncadd [#allocation4], 0
      %s311 = sshll.u32 [#allocation11], 4
      %s312 = int_to_ptr.vmem [resolvable:$true] %s311
      %s313 = sshll.u32 %s9, 4
      %s314 = int_to_ptr.hbm [resolvable:$true] %s313
      %316 = dma.vmem_to_hbm [thread:$0]  %s312, 128, %s314, [#allocation4]
    $region61: #{tpu_custom_call.1} parent=1 // pred_fallthru
      _
    // Predicated region
    $region62: #{tpu_custom_call.1} parent=1 // pred_check
      _
    $region63: #{tpu_custom_call.1} parent=1 // pred_check_branch
      %318 = sbr.rel (0) target = $region65
    $region64: #{tpu_custom_call.1} parent=1 // pred_region
      %320 = dma.done [#allocation4], 128
    $region65: #{tpu_custom_call.1} parent=1 // pred_fallthru
      _
    %321 = vsyncpa [#allocation3], 1
    %322 = vsyncpa [#allocation6], 1
    %323 = vsyncpa [#allocation9], 1
    %324 = vsyncpa [#allocation4], 1

// kernel: tpu_custom_call.1
$region0: #{tpu_custom_call.1}
  #allocation0 [shape = 'u32[]', space=smem, size = 0x4, offset = 0x4, fixed_abs, tag = 'smem constant byte address 0x4 - core index']
  #allocation1 [shape = 'u32[72,128]{1,0:T(1,128)}', space=vmem, size = 0x9000, scoped, tag = 'internal scratch']
  %s0 = inlined_call_operand.hbm [shape: f32[8,128], index: 0, kind: input, shape index: {}]
  %s1 = inlined_call_operand.hbm [shape: f32[128,128], index: 1, kind: input, shape index: {}]
  %s2 = inlined_call_operand.vmem [shape: f32[1,128], index: 2, kind: input, shape index: {}]
  %s3 = inlined_call_operand.hbm [shape: f32[128,128], index: 3, kind: input, shape index: {}]
  %s4 = inlined_call_operand.vmem [shape: f32[1,128], index: 4, kind: input, shape index: {}]
  %s5 = inlined_call_operand.hbm [shape: f32[128,128], index: 5, kind: input, shape index: {}]
  %s6 = inlined_call_operand.vmem [shape: f32[1,128], index: 6, kind: input, shape index: {}]
  %s7 = inlined_call_operand.hbm [shape: f32[128,128], index: 7, kind: input, shape index: {}]
  %s8 = inlined_call_operand.vmem [shape: f32[1,128], index: 8, kind: input, shape index: {}]
  %s9 = inlined_call_operand.hbm [shape: f32[8,128], index: 9, kind: output, shape index: {}]
  %s10 = sld [smem:[#allocation0]]
  $region66: #{tpu_custom_call.1} parent=0
    _
  %s12 = ssub.s32 1, %s10
  %s13 = scalar_select 0, %s12, %s10
  $region1: #{tpu_custom_call.1} parent=0
    #allocation2 [shape = 'u8[4096]{0}', space=vmem, size = 0x1000, scoped, tag = 'input window, operand 0, single buffered']
    #allocation3 [shape = 's32[1]{0}', space=sflag, size = 0x4, scoped, tag = 'scoped memory for tpu_custom_call.1']
    #allocation4 [shape = 's32[1]{0}', space=sflag, size = 0x4, scoped, tag = 'scoped memory for tpu_custom_call.1']
    #allocation5 [shape = 'u8[65536]{0}', space=vmem, size = 0x10000, scoped, tag = 'input window, operand 1, single buffered']
    #allocation6 [shape = 's32[1]{0}', space=sflag, size = 0x4, scoped, tag = 'scoped memory for tpu_custom_call.1']
    #allocation7 [shape = 'u8[65536]{0}', space=vmem, size = 0x10000, scoped, tag = 'input window, operand 3, single buffered']
    #allocation8 [shape = 'u8[65536]{0}', space=vmem, size = 0x10000, scoped, tag = 'input window, operand 5, single buffered']
    #allocation9 [shape = 's32[1]{0}', space=sflag, size = 0x4, scoped, tag = 'scoped memory for tpu_custom_call.1']
    #allocation10 [shape = 'u8[65536]{0}', space=vmem, size = 0x10000, scoped, tag = 'input window, operand 7, single buffered']
    #allocation11 [shape = 'u8[4096]{0}', space=vmem, size = 0x1000, scoped, tag = 'output window, operand 0, single buffered']
    %14 = vsyncpa [#allocation3], 0
    %15 = vsyncpa [#allocation6], 0
    %16 = vsyncpa [#allocation9], 0
    %17 = vsyncpa [#allocation4], 0
    // Predicated region
    $region2: #{tpu_custom_call.1} parent=1 // pred_check
      _
    $region3: #{tpu_custom_call.1} parent=1 // pred_check_branch
      %19 = sbr.rel (0) target = $region5
    $region4: #{tpu_custom_call.1} parent=1 // pred_region
      %21 = vsyncadd [#allocation3], 0
      %s23 = sshll.u32 %s0, 4
      %s24 = int_to_ptr.hbm [resolvable:$true] %s23
      %s25 = sshll.u32 [#allocation2], 4
      %s26 = int_to_ptr.vmem [resolvable:$true] %s25
      %28 = dma.hbm_to_vmem [thread:$0]  %s24, 128, %s26, [#allocation3]
    $region5: #{tpu_custom_call.1} parent=1 // pred_fallthru
      _
    // Predicated region
    $region6: #{tpu_custom_call.1} parent=1 // pred_check
      _
    $region7: #{tpu_custom_call.1} parent=1 // pred_check_branch
      %30 = sbr.rel (0) target = $region9
    $region8: #{tpu_custom_call.1} parent=1 // pred_region
      %32 = vsyncadd [#allocation6], 0
      %s33 = sshll.u32 %s1, 4
      %s34 = int_to_ptr.hbm [resolvable:$true] %s33
      %s35 = sshll.u32 [#allocation5], 4
      %s36 = int_to_ptr.vmem [resolvable:$true] %s35
      %41 = dma.hbm_to_vmem [thread:$0]  %s34, 2048, %s36, [#allocation6], 128, 128, 8
    $region9: #{tpu_custom_call.1} parent=1 // pred_fallthru
      _
    // Predicated region
    $region10: #{tpu_custom_call.1} parent=1 // pred_check
      _
    $region11: #{tpu_custom_call.1} parent=1 // pred_check_branch
      %43 = sbr.rel (0) target = $region13
    $region12: #{tpu_custom_call.1} parent=1 // pred_region
      _
    $region13: #{tpu_custom_call.1} parent=1 // pred_fallthru
      _
    // Predicated region
    $region14: #{tpu_custom_call.1} parent=1 // pred_check
      _
    $region15: #{tpu_custom_call.1} parent=1 // pred_check_branch
      %45 = sbr.rel (0) target = $region17
    $region16: #{tpu_custom_call.1} parent=1 // pred_region
      %47 = vsyncadd [#allocation6], 0
      %s48 = sshll.u32 %s3, 4
      %s49 = int_to_ptr.hbm [resolvable:$true] %s48
      %s50 = sshll.u32 [#allocation7], 4
      %s51 = int_to_ptr.vmem [resolvable:$true] %s50
      %56 = dma.hbm_to_vmem [thread:$0]  %s49, 2048, %s51, [#allocation6], 128, 128, 8
    $region17: #{tpu_custom_call.1} parent=1 // pred_fallthru
      _
    // Predicated region
    $region18: #{tpu_custom_call.1} parent=1 // pred_check
      _
    $region19: #{tpu_custom_call.1} parent=1 // pred_check_branch
      %58 = sbr.rel (0) target = $region21
    $region20: #{tpu_custom_call.1} parent=1 // pred_region
      _
    $region21: #{tpu_custom_call.1} parent=1 // pred_fallthru
      _
    // Predicated region
    $region22: #{tpu_custom_call.1} parent=1 // pred_check
      _
    $region23: #{tpu_custom_call.1} parent=1 // pred_check_branch
      %60 = sbr.rel (0) target = $region25
    $region24: #{tpu_custom_call.1} parent=1 // pred_region
      %62 = vsyncadd [#allocation9], 0
      %s63 = sshll.u32 %s5, 4
      %s64 = int_to_ptr.hbm [resolvable:$true] %s63
      %s65 = sshll.u32 [#allocation8], 4
      %s66 = int_to_ptr.vmem [resolvable:$true] %s65
      %71 = dma.hbm_to_vmem [thread:$0]  %s64, 2048, %s66, [#allocation9], 128, 128, 8
    $region25: #{tpu_custom_call.1} parent=1 // pred_fallthru
      _
    // Predicated region
    $region26: #{tpu_custom_call.1} parent=1 // pred_check
      _
    $region27: #{tpu_custom_call.1} parent=1 // pred_check_branch
      %73 = sbr.rel (0) target = $region29
    $region28: #{tpu_custom_call.1} parent=1 // pred_region
      _
    $region29: #{tpu_custom_call.1} parent=1 // pred_fallthru
      _
    // Predicated region
    $region30: #{tpu_custom_call.1} parent=1 // pred_check
      _
    $region31: #{tpu_custom_call.1} parent=1 // pred_check_branch
      %75 = sbr.rel (0) target = $region33
    $region32: #{tpu_custom_call.1} parent=1 // pred_region
      %77 = vsyncadd [#allocation9], 0
      %s78 = sshll.u32 %s7, 4
      %s79 = int_to_ptr.hbm [resolvable:$true] %s78
      %s80 = sshll.u32 [#allocation10], 4
      %s81 = int_to_ptr.vmem [resolvable:$true] %s80
      %86 = dma.hbm_to_vmem [thread:$0]  %s79, 2048, %s81, [#allocation9], 128, 128, 8
    $region33: #{tpu_custom_call.1} parent=1 // pred_fallthru
      _
    // Predicated region
    $region34: #{tpu_custom_call.1} parent=1 // pred_check
      _
    $region35: #{tpu_custom_call.1} parent=1 // pred_check_branch
      %88 = sbr.rel (0) target = $region37
    $region36: #{tpu_custom_call.1} parent=1 // pred_region
      _
    $region37: #{tpu_custom_call.1} parent=1 // pred_fallthru
      _
    // Predicated region
    $region38: #{tpu_custom_call.1} parent=1 // pred_check
      _
    $region39: #{tpu_custom_call.1} parent=1 // pred_check_branch
      %90 = sbr.rel (0) target = $region41
    $region40: #{tpu_custom_call.1} parent=1 // pred_region
      %92 = dma.done [#allocation3], 128
    $region41: #{tpu_custom_call.1} parent=1 // pred_fallthru
      _
    // Predicated region
    $region42: #{tpu_custom_call.1} parent=1 // pred_check
      _
    $region43: #{tpu_custom_call.1} parent=1 // pred_check_branch
      %94 = sbr.rel (0) target = $region45
    $region44: #{tpu_custom_call.1} parent=1 // pred_region
      %96 = dma.done [#allocation6], 2048
    $region45: #{tpu_custom_call.1} parent=1 // pred_fallthru
      _
    // Predicated region
    $region46: #{tpu_custom_call.1} parent=1 // pred_check
      _
    $region47: #{tpu_custom_call.1} parent=1 // pred_check_branch
      %98 = sbr.rel (0) target = $region49
    $region48: #{tpu_custom_call.1} parent=1 // pred_region
      %100 = dma.done [#allocation6], 2048
    $region49: #{tpu_custom_call.1} parent=1 // pred_fallthru
      _
    // Predicated region
    $region50: #{tpu_custom_call.1} parent=1 // pred_check
      _
    $region51: #{tpu_custom_call.1} parent=1 // pred_check_branch
      %102 = sbr.rel (0) target = $region53
    $region52: #{tpu_custom_call.1} parent=1 // pred_region
      %104 = dma.done [#allocation9], 2048
    $region53: #{tpu_custom_call.1} parent=1 // pred_fallthru
      _
    // Predicated region
    $region54: #{tpu_custom_call.1} parent=1 // pred_check
      _
    $region55: #{tpu_custom_call.1} parent=1 // pred_check_branch
      %106 = sbr.rel (0) target = $region57
    $region56: #{tpu_custom_call.1} parent=1 // pred_region
      %108 = dma.done [#allocation9], 2048
    $region57: #{tpu_custom_call.1} parent=1 // pred_fallthru
      _
    %v109 = vld [vmem:[#allocation2] sm:$0xff]
    %v110 = vld [vmem:[#allocation5] sm:$0xff]
    %v111 = vld [vmem:[#allocation5 + $0x8] sm:$0xff]
    %v112 = vld [vmem:[#allocation5 + $0x10] sm:$0xff]
    %v113 = vld [vmem:[#allocation5 + $0x18] sm:$0xff]
    %v114 = vld [vmem:[#allocation5 + $0x20] sm:$0xff]
    %v115 = vld [vmem:[#allocation5 + $0x28] sm:$0xff]
    %v116 = vld [vmem:[#allocation5 + $0x30] sm:$0xff]
    %v117 = vld [vmem:[#allocation5 + $0x38] sm:$0xff]
    %v118 = vld [vmem:[#allocation5 + $0x40] sm:$0xff]
    %v119 = vld [vmem:[#allocation5 + $0x48] sm:$0xff]
    %v120 = vld [vmem:[#allocation5 + $0x50] sm:$0xff]
    %v121 = vld [vmem:[#allocation5 + $0x58] sm:$0xff]
    %v122 = vld [vmem:[#allocation5 + $0x60] sm:$0xff]
    %v123 = vld [vmem:[#allocation5 + $0x68] sm:$0xff]
    %v124 = vld [vmem:[#allocation5 + $0x70] sm:$0xff]
    %v125 = vld [vmem:[#allocation5 + $0x78] sm:$0xff]
    %v126 = vld [vmem:[%s2] sm:$0x1]
    %v128 = vperm.slane %v126, 0
    %130 = vmatpush.msra.mxu0 %v125
    %131 = vmatpush.msra.mxu0 %v124
    %132 = vmatpush.msra.mxu0 %v123
    %133 = vmatpush.msra.mxu0 %v122
    %134 = vmatpush.msra.mxu0 %v121
    %135 = vmatpush.msra.mxu0 %v120
    %136 = vmatpush.msra.mxu0 %v119
    %137 = vmatpush.msra.mxu0 %v118
    %138 = vmatpush.msra.mxu0 %v117
    %139 = vmatpush.msra.mxu0 %v116
    %140 = vmatpush.msra.mxu0 %v115
    %141 = vmatpush.msra.mxu0 %v114
    %142 = vmatpush.msra.mxu0 %v113
    %143 = vmatpush.msra.mxu0 %v112
    %144 = vmatpush.msra.mxu0 %v111
    %145 = vmatpush.msra.mxu0 %v110
    %146 = vmatmul.f32.gmra.mxu0 %v109
    %v147 = vpop.f32.mrf.mxu0
    %v148 = vadd.f32 %v128, %v147
    %149 = vdwg.mxu0
    %v150 = vmul.f32 %v148, %v148
    %v151 = vmul.f32 %v148, 0.5
    %v152 = vmul.f32 %v150, 0.035677407
    %v153 = vadd.f32 %v152, 0.7978846
    %v154 = vmul.f32 %v148, %v153
    %v155 = vtanh.pop %v154
    %v156 = vadd.f32 %v155, 1.0
    %v157 = vmul.f32 %v151, %v156
    %v158 = vadd.f32 %v109, %v157
    %v159 = vld [vmem:[#allocation7] sm:$0xff]
    %v160 = vld [vmem:[#allocation7 + $0x8] sm:$0xff]
    %v161 = vld [vmem:[#allocation7 + $0x10] sm:$0xff]
    %v162 = vld [vmem:[#allocation7 + $0x18] sm:$0xff]
    %v163 = vld [vmem:[#allocation7 + $0x20] sm:$0xff]
    %v164 = vld [vmem:[#allocation7 + $0x28] sm:$0xff]
    %v165 = vld [vmem:[#allocation7 + $0x30] sm:$0xff]
    %v166 = vld [vmem:[#allocation7 + $0x38] sm:$0xff]
    %v167 = vld [vmem:[#allocation7 + $0x40] sm:$0xff]
    %v168 = vld [vmem:[#allocation7 + $0x48] sm:$0xff]
    %v169 = vld [vmem:[#allocation7 + $0x50] sm:$0xff]
    %v170 = vld [vmem:[#allocation7 + $0x58] sm:$0xff]
    %v171 = vld [vmem:[#allocation7 + $0x60] sm:$0xff]
    %v172 = vld [vmem:[#allocation7 + $0x68] sm:$0xff]
    %v173 = vld [vmem:[#allocation7 + $0x70] sm:$0xff]
    %v174 = vld [vmem:[#allocation7 + $0x78] sm:$0xff]
    %v175 = vld [vmem:[%s4] sm:$0x1]
    %v177 = vperm.slane %v175, 0
    %179 = vmatpush.msra.mxu0 %v174
    %180 = vmatpush.msra.mxu0 %v173
    %181 = vmatpush.msra.mxu0 %v172
    %182 = vmatpush.msra.mxu0 %v171
    %183 = vmatpush.msra.mxu0 %v170
    %184 = vmatpush.msra.mxu0 %v169
    %185 = vmatpush.msra.mxu0 %v168
    %186 = vmatpush.msra.mxu0 %v167
    %187 = vmatpush.msra.mxu0 %v166
    %188 = vmatpush.msra.mxu0 %v165
    %189 = vmatpush.msra.mxu0 %v164
    %190 = vmatpush.msra.mxu0 %v163
    %191 = vmatpush.msra.mxu0 %v162
    %192 = vmatpush.msra.mxu0 %v161
    %193 = vmatpush.msra.mxu0 %v160
    %194 = vmatpush.msra.mxu0 %v159
    %195 = vmatmul.f32.gmra.mxu0 %v158
    %v196 = vpop.f32.mrf.mxu0
    %v197 = vadd.f32 %v177, %v196
    %198 = vdwg.mxu0
    %v199 = vmul.f32 %v197, %v197
    %v200 = vmul.f32 %v197, 0.5
    %v201 = vmul.f32 %v199, 0.035677407
    %v202 = vadd.f32 %v201, 0.7978846
    %v203 = vmul.f32 %v197, %v202
    %v204 = vtanh.pop %v203
    %v205 = vadd.f32 %v204, 1.0
    %v206 = vmul.f32 %v200, %v205
    %v207 = vadd.f32 %v158, %v206
    %v208 = vld [vmem:[#allocation8] sm:$0xff]
    %v209 = vld [vmem:[#allocation8 + $0x8] sm:$0xff]
    %v210 = vld [vmem:[#allocation8 + $0x10] sm:$0xff]
    %v211 = vld [vmem:[#allocation8 + $0x18] sm:$0xff]
    %v212 = vld [vmem:[#allocation8 + $0x20] sm:$0xff]
    %v213 = vld [vmem:[#allocation8 + $0x28] sm:$0xff]
    %v214 = vld [vmem:[#allocation8 + $0x30] sm:$0xff]
    %v215 = vld [vmem:[#allocation8 + $0x38] sm:$0xff]
    %v216 = vld [vmem:[#allocation8 + $0x40] sm:$0xff]
    %v217 = vld [vmem:[#allocation8 + $0x48] sm:$0xff]
    %v218 = vld [vmem:[#allocation8 + $0x50] sm:$0xff]
    %v219 = vld [vmem:[#allocation8 + $0x58] sm:$0xff]
    %v220 = vld [vmem:[#allocation8 + $0x60] sm:$0xff]
    %v221 = vld [vmem:[#allocation8 + $0x68] sm:$0xff]
    %v222 = vld [vmem:[#allocation8 + $0x70] sm:$0xff]
    %v223 = vld [vmem:[#allocation8 + $0x78] sm:$0xff]
    %v224 = vld [vmem:[%s6] sm:$0x1]
    %v226 = vperm.slane %v224, 0
    %228 = vmatpush.msra.mxu0 %v223
    %229 = vmatpush.msra.mxu0 %v222
    %230 = vmatpush.msra.mxu0 %v221
    %231 = vmatpush.msra.mxu0 %v220
    %232 = vmatpush.msra.mxu0 %v219
    %233 = vmatpush.msra.mxu0 %v218
    %234 = vmatpush.msra.mxu0 %v217
    %235 = vmatpush.msra.mxu0 %v216
    %236 = vmatpush.msra.mxu0 %v215
    %237 = vmatpush.msra.mxu0 %v214
    %238 = vmatpush.msra.mxu0 %v213
    %239 = vmatpush.msra.mxu0 %v212
    %240 = vmatpush.msra.mxu0 %v211
    %241 = vmatpush.msra.mxu0 %v210
    %242 = vmatpush.msra.mxu0 %v209
    %243 = vmatpush.msra.mxu0 %v208
    %244 = vmatmul.f32.gmra.mxu0 %v207
    %v245 = vpop.f32.mrf.mxu0
    %v246 = vadd.f32 %v226, %v245
    %247 = vdwg.mxu0
    %v248 = vmul.f32 %v246, %v246
    %v249 = vmul.f32 %v246, 0.5
    %v250 = vmul.f32 %v248, 0.035677407
    %v251 = vadd.f32 %v250, 0.7978846
    %v252 = vmul.f32 %v246, %v251
    %v253 = vtanh.pop %v252
    %v254 = vadd.f32 %v253, 1.0
    %v255 = vmul.f32 %v249, %v254
    %v256 = vadd.f32 %v207, %v255
    %v257 = vld [vmem:[#allocation10] sm:$0xff]
    %v258 = vld [vmem:[#allocation10 + $0x8] sm:$0xff]
    %v259 = vld [vmem:[#allocation10 + $0x10] sm:$0xff]
    %v260 = vld [vmem:[#allocation10 + $0x18] sm:$0xff]
    %v261 = vld [vmem:[#allocation10 + $0x20] sm:$0xff]
    %v262 = vld [vmem:[#allocation10 + $0x28] sm:$0xff]
    %v263 = vld [vmem:[#allocation10 + $0x30] sm:$0xff]
    %v264 = vld [vmem:[#allocation10 + $0x38] sm:$0xff]
    %v265 = vld [vmem:[#allocation10 + $0x40] sm:$0xff]
    %v266 = vld [vmem:[#allocation10 + $0x48] sm:$0xff]
    %v267 = vld [vmem:[#allocation10 + $0x50] sm:$0xff]
    %v268 = vld [vmem:[#allocation10 + $0x58] sm:$0xff]
    %v269 = vld [vmem:[#allocation10 + $0x60] sm:$0xff]
    %v270 = vld [vmem:[#allocation10 + $0x68] sm:$0xff]
    %v271 = vld [vmem:[#allocation10 + $0x70] sm:$0xff]
    %v272 = vld [vmem:[#allocation10 + $0x78] sm:$0xff]
    %v273 = vld [vmem:[%s8] sm:$0x1]
    %v275 = vperm.slane %v273, 0
    %277 = vmatpush.msra.mxu0 %v272
    %278 = vmatpush.msra.mxu0 %v271
    %279 = vmatpush.msra.mxu0 %v270
    %280 = vmatpush.msra.mxu0 %v269
    %281 = vmatpush.msra.mxu0 %v268
    %282 = vmatpush.msra.mxu0 %v267
    %283 = vmatpush.msra.mxu0 %v266
    %284 = vmatpush.msra.mxu0 %v265
    %285 = vmatpush.msra.mxu0 %v264
    %286 = vmatpush.msra.mxu0 %v263
    %287 = vmatpush.msra.mxu0 %v262
    %288 = vmatpush.msra.mxu0 %v261
    %289 = vmatpush.msra.mxu0 %v260
    %290 = vmatpush.msra.mxu0 %v259
    %291 = vmatpush.msra.mxu0 %v258
    %292 = vmatpush.msra.mxu0 %v257
    %293 = vmatmul.f32.gmra.mxu0 %v256
    %v294 = vpop.f32.mrf.mxu0
    %v295 = vadd.f32 %v275, %v294
    %296 = vdwg.mxu0
    %v297 = vmul.f32 %v295, %v295
    %v298 = vmul.f32 %v295, 0.5
    %v299 = vmul.f32 %v297, 0.035677407
    %v300 = vadd.f32 %v299, 0.7978846
    %v301 = vmul.f32 %v295, %v300
    %v302 = vtanh.pop %v301
    %v303 = vadd.f32 %v302, 1.0
    %v304 = vmul.f32 %v298, %v303
    %305 = vst [vmem:[#allocation11] sm:$0xff] %v304
    // Predicated region
    $region58: #{tpu_custom_call.1} parent=1 // pred_check
      _
    $region59: #{tpu_custom_call.1} parent=1 // pred_check_branch
      %307 = sbr.rel (0) target = $region61
    $region60: #{tpu_custom_call.1} parent=1 // pred_region
      %309 = vsyncadd [#allocation4], 0
      %s311 = sshll.u32 [#allocation11], 4
      %s312 = int_to_ptr.vmem [resolvable:$true] %s311
      %s313 = sshll.u32 %s9, 4
      %s314 = int_to_ptr.hbm [resolvable:$true] %s313
      %316 = dma.vmem_to_hbm [thread:$0]  %s312, 128, %s314, [#allocation4]
    $region61: #{tpu_custom_call.1} parent=1 // pred_fallthru
      _
    // Predicated region
    $region62: #{tpu_custom_call.1} parent=1 // pred_check
      _
    $region63: #{tpu_custom_call.1} parent=1 // pred_check_branch
      %318 = sbr.rel (0) target = $region65
    $region64: #{tpu_custom_call.1} parent=1 // pred_region
      %320 = dma.done [#allocation4], 128
    $region65: #{tpu_custom_call.1} parent=1 // pred_fallthru
      _
    %321 = vsyncpa [#allocation3], 1
    %322 = vsyncpa [#allocation6], 1
    %323 = vsyncpa [#allocation9], 1
    %324 = vsyncpa [#allocation4], 1

</llo_original>
